<compile_context>
chip_gen: v6e
topology: v6e:2x2x1
jax: 0.10.0
libtpu: 0.0.40
codegen_flags: <defaults>
</compile_context>

<pallas_src>
import functools

import jax
import jax.numpy as jnp
from jax.experimental import pallas as pl
from jax.experimental.pallas import tpu as pltpu

LANES = 128
SUBLANES = 8
MAX_BLOCK_R = 4096                       # 4096 x 128 f32 = 2 MiB / input / buffer
VMEM_LIMIT_BYTES = 48 * 1024 * 1024      # headroom for double buffers + temps

_ALPHA = 0.75                            # focal alpha (gamma == 2, hard-coded)
_SMOOTH = 1.0
_SCALE = 0.999                           # squash: p = 0.999*sigmoid(x) + 0.0005
_SHIFT = 0.0005


def _squash(x):
    # 0.999 * (sigmoid(x) - 0.5) + 0.5  ==  0.999 * sigmoid(x) + 0.0005
    return _SCALE * jax.nn.sigmoid(x) + _SHIFT


def _fold(v, block_r):
    # (block_r, 128) -> (block_r//8, 8, 128), summed over axis 0: tile-aligned
    # reshape + pure VPU adds; no cross-lane movement inside the kernel.
    return jnp.sum(v.reshape(block_r // SUBLANES, SUBLANES, LANES), axis=0)


def _row_mask(block_r, valid_rows):
    row = jax.lax.broadcasted_iota(jnp.int32, (block_r, LANES), 0)
    return row < valid_rows


def _iou_sums_kernel(x_ref, t_ref, part_ref, *, block_r, last_rows):
    """Per-block partial sums of (p, t, p*t) -> part_ref[0]: (3, 8, 128)."""
    i = pl.program_id(0)
    nb = pl.num_programs(0)

    def emit(masked):
        x = x_ref[...].astype(jnp.float32)
        t = t_ref[...].astype(jnp.float32)
        p = _squash(x)
        if masked:
            valid = _row_mask(block_r, last_rows)
            p = jnp.where(valid, p, 0.0)
            t = jnp.where(valid, t, 0.0)
        part_ref[0, 0, :, :] = _fold(p, block_r)
        part_ref[0, 1, :, :] = _fold(t, block_r)
        part_ref[0, 2, :, :] = _fold(p * t, block_r)

    if last_rows == block_r:
        emit(False)                       # exact tiling: never build the mask
    else:
        @pl.when(i < nb - 1)
        def _():
            emit(False)

        @pl.when(i == nb - 1)             # only the last block can be ragged
        def _():
            emit(True)


def _focal_kernel(sums_ref, x_ref, t_ref, part_ref, *, block_r, last_rows):
    """Per-block partial sums of the IoU-modulated focal loss -> (8, 128)."""
    i = pl.program_id(0)
    nb = pl.num_programs(0)

    # IoU and derived scalars: once per block, on the scalar path (SMEM reads).
    sp = sums_ref[0]
    st = sums_ref[1]
    si = sums_ref[2]
    iou = (si + _SMOOTH) / (sp + st - si + _SMOOTH)
    one_minus_iou = 1.0 - iou
    exponent = iou * 0.5 + 0.5

    def emit(masked):
        x = x_ref[...].astype(jnp.float32)
        t = t_ref[...].astype(jnp.float32)
        p = _squash(x)                                # p in [0.0005, 0.9995]
        # Exact two-log BCE (matches the reference for soft targets too).
        bce = -(t * jnp.log(p) + (1.0 - t) * jnp.log(1.0 - p))
        pt = jnp.exp(-bce)
        one_minus_pt = 1.0 - pt
        f_loss = (one_minus_pt * one_minus_pt) * bce  # gamma == 2
        # f_loss > 0 is guaranteed by the squash, so pow == exp(e * log f).
        f_loss = one_minus_iou * jnp.exp(exponent * jnp.log(f_loss))
        at = t * _ALPHA + (1.0 - t) * (1.0 - _ALPHA)
        contrib = at * f_loss
        if masked:
            # Single select at the end; NaN/Inf from padded rows cannot leak.
            contrib = jnp.where(_row_mask(block_r, last_rows), contrib, 0.0)
        part_ref[0, :, :] = _fold(contrib, block_r)

    if last_rows == block_r:
        emit(False)
    else:
        @pl.when(i < nb - 1)
        def _():
            emit(False)

        @pl.when(i == nb - 1)
        def _():
            emit(True)


def _tail_sums(x, t):
    p = _squash(x)
    return jnp.stack([jnp.sum(p), jnp.sum(t), jnp.sum(p * t)])


def _tail_focal(x, t, sums):
    iou = (sums[2] + _SMOOTH) / (sums[0] + sums[1] - sums[2] + _SMOOTH)
    p = _squash(x)
    bce = -(t * jnp.log(p) + (1.0 - t) * jnp.log(1.0 - p))
    pt = jnp.exp(-bce)
    f = (1.0 - pt) ** 2 * bce
    at = t * _ALPHA + (1.0 - t) * (1.0 - _ALPHA)
    return jnp.sum(at * (1.0 - iou) * f ** (iou * 0.5 + 0.5))


def focal_iou_loss(inputs, targets):
    """Pallas implementation of FocalIoULoss.forward. Returns an f32 scalar."""
    x = inputs.reshape(-1)
    t = targets.reshape(-1)
    n = x.shape[0]

    rows = n // LANES
    n_main = rows * LANES

    # <128-element remainder handled in plain JAX (only hit when
    # numel % 128 != 0; the 128-aligned common case is copy-free).
    tail_x = tail_t = None
    if n_main != n:
        tail_x = x[n_main:].astype(jnp.float32)
        tail_t = t[n_main:].astype(jnp.float32)
        x = x[:n_main]
        t = t[:n_main]

    if rows == 0:                          # tiny input: pure-JAX fallback
        sums = _tail_sums(tail_x, tail_t)
        return _tail_focal(tail_x, tail_t, sums)

    # Lane-dense (rows, 128) view: free reshape, native dtype.
    x2 = x.reshape(rows, LANES)
    t2 = t.reshape(rows, LANES)

    block_r = min(MAX_BLOCK_R, SUBLANES * pl.cdiv(rows, SUBLANES))
    num_blocks = pl.cdiv(rows, block_r)
    last_rows = rows - (num_blocks - 1) * block_r   # valid rows in last block

    grid = (num_blocks,)
    in_spec = pl.BlockSpec((block_r, LANES), lambda i: (i, 0))
    smem_spec = pl.BlockSpec(memory_space=pltpu.MemorySpace.SMEM)
    # Per-block partial outputs -> no cross-step carry -> fully parallel axis
    # (v7x: sharded across both TensorCores; v5e/v6e: neutral).
    cparams = pltpu.CompilerParams(
        dimension_semantics=("parallel",),
        vmem_limit_bytes=VMEM_LIMIT_BYTES)

    # Pass 1: per-block partial sums for the IoU.
    part1 = pl.pallas_call(
        functools.partial(_iou_sums_kernel, block_r=block_r,
                          last_rows=last_rows),
        out_shape=jax.ShapeDtypeStruct((num_blocks, 3, SUBLANES, LANES),
                                       jnp.float32),
        grid_spec=pltpu.PrefetchScalarGridSpec(
            num_scalar_prefetch=0,
            grid=grid,
            in_specs=[in_spec, in_spec],
            out_specs=pl.BlockSpec((1, 3, SUBLANES, LANES),
                                   lambda i: (i, 0, 0, 0)),
        ),
        compiler_params=cparams,
    )(x2, t2)

    sums = jnp.sum(part1, axis=(0, 2, 3))            # (3,): sum p, sum t, sum p*t
    if tail_x is not None:
        sums = sums + _tail_sums(tail_x, tail_t)

    # Pass 2: IoU-modulated focal term, per-block partial sums.
    part2 = pl.pallas_call(
        functools.partial(_focal_kernel, block_r=block_r,
                          last_rows=last_rows),
        out_shape=jax.ShapeDtypeStruct((num_blocks, SUBLANES, LANES),
                                       jnp.float32),
        grid_spec=pltpu.PrefetchScalarGridSpec(
            num_scalar_prefetch=0,
            grid=grid,
            in_specs=[smem_spec, in_spec, in_spec],
            out_specs=pl.BlockSpec((1, SUBLANES, LANES),
                                   lambda i: (i, 0, 0)),
        ),
        compiler_params=cparams,
    )(sums, x2, t2)

    loss = jnp.sum(part2)
    if tail_x is not None:
        loss = loss + _tail_focal(tail_x, tail_t, sums)
    return loss


def _focal_iou_loss_ref(inputs, targets):
    # Pure-JAX mirror of the PyTorch forward, used as a silent check.
    p = 0.999 * (jax.nn.sigmoid(inputs) - 0.5) + 0.5
    t = targets
    bce = -(t * jnp.log(p) + (1 - t) * jnp.log(1 - p))
    inter = p * t
    iou = (inter.sum() + 1.0) / (p.sum() + t.sum() - inter.sum() + 1.0)
    pt = jnp.exp(-bce)
    f = (1 - pt) ** 2 * bce
    at = t * 0.75 + (1 - t) * 0.25
    f = (1 - iou) * f ** (iou * 0.5 + 0.5)
    return (at * f).sum()


if __name__ == "__main__":
    key = jax.random.PRNGKey(0)
    k1, k2 = jax.random.split(key)
    shape = (2, 4, 16, 16)
    inputs = jax.random.normal(k1, shape, dtype=jnp.float32)        # logits
    targets = jax.random.bernoulli(k2, 0.5, shape).astype(jnp.float32)

    loss_fn = jax.jit(focal_iou_loss)
    out = jax.block_until_ready(loss_fn(inputs, targets))

    ref = _focal_iou_loss_ref(inputs, targets)
    assert jnp.allclose(out, ref, rtol=1e-4, atol=1e-5), (out, ref)

    print("KERNEL_OK")
</pallas_src>

<mosaic_0001>
module attributes {stable_mosaic.version = 11 : i64} {
  func.func @_iou_sums_kernel(%arg0: i32, %arg1: memref<16x128xf32, #tpu.memory_space<vmem>>, %arg2: memref<16x128xf32, #tpu.memory_space<vmem>>, %arg3: memref<1x3x8x128xf32, #tpu.memory_space<vmem>>) attributes {dimension_semantics = [#tpu.dimension_semantics<parallel>], iteration_bounds = array<i64: 1>, scalar_prefetch = 0 : i64, scratch_operands = 0 : i64, tpu.core_type = #tpu.core_type<tc>, window_params = [{transform_indices = @transform_0, window_bounds = array<i64: 16, 128>}, {transform_indices = @transform_1, window_bounds = array<i64: 16, 128>}, {transform_indices = @transform_2, window_bounds = array<i64: 1, 3, 8, 128>}]} {
    %c0 = arith.constant 0 : index
    %c0_0 = arith.constant 0 : index
    %0 = vector.load %arg1[%c0, %c0_0] : memref<16x128xf32, #tpu.memory_space<vmem>>, vector<16x128xf32>
    %c0_1 = arith.constant 0 : index
    %c0_2 = arith.constant 0 : index
    %1 = vector.load %arg2[%c0_1, %c0_2] : memref<16x128xf32, #tpu.memory_space<vmem>>, vector<16x128xf32>
    %2 = arith.negf %0 : vector<16x128xf32>
    %3 = math.exp %2 : vector<16x128xf32>
    %cst = arith.constant 1.000000e+00 : f32
    %4 = vector.broadcast %cst : f32 to vector<16x128xf32>
    %5 = arith.addf %4, %3 : vector<16x128xf32>
    %6 = arith.divf %4, %5 : vector<16x128xf32>
    %cst_3 = arith.constant 9.990000e-01 : f32
    %7 = vector.broadcast %cst_3 : f32 to vector<16x128xf32>
    %8 = arith.mulf %7, %6 : vector<16x128xf32>
    %cst_4 = arith.constant 5.000000e-04 : f32
    %9 = vector.broadcast %cst_4 : f32 to vector<16x128xf32>
    %10 = arith.addf %8, %9 : vector<16x128xf32>
    %11 = vector.shape_cast %10 : vector<16x128xf32> to vector<2x8x128xf32>
    %cst_5 = arith.constant dense<0.000000e+00> : vector<8x128xf32>
    %12 = vector.multi_reduction <add>, %11, %cst_5 [0] : vector<2x8x128xf32> to vector<8x128xf32>
    %c0_6 = arith.constant 0 : index
    %c0_7 = arith.constant 0 : index
    %c0_8 = arith.constant 0 : index
    %c0_9 = arith.constant 0 : index
    %13 = vector.load %arg3[%c0_6, %c0_7, %c0_8, %c0_9] : memref<1x3x8x128xf32, #tpu.memory_space<vmem>>, vector<1x1x8x128xf32>
    %14 = vector.shape_cast %13 : vector<1x1x8x128xf32> to vector<8x128xf32>
    %15 = vector.shape_cast %12 : vector<8x128xf32> to vector<1x1x8x128xf32>
    tpu.vector_store %arg3[%c0_6, %c0_7, %c0_8, %c0_9], %15 {strides = array<i32>} : memref<1x3x8x128xf32, #tpu.memory_space<vmem>>, vector<1x1x8x128xf32>,
    %16 = vector.shape_cast %1 : vector<16x128xf32> to vector<2x8x128xf32>
    %cst_10 = arith.constant dense<0.000000e+00> : vector<8x128xf32>
    %17 = vector.multi_reduction <add>, %16, %cst_10 [0] : vector<2x8x128xf32> to vector<8x128xf32>
    %c0_11 = arith.constant 0 : index
    %c1 = arith.constant 1 : index
    %c0_12 = arith.constant 0 : index
    %c0_13 = arith.constant 0 : index
    %18 = vector.load %arg3[%c0_11, %c1, %c0_12, %c0_13] : memref<1x3x8x128xf32, #tpu.memory_space<vmem>>, vector<1x1x8x128xf32>
    %19 = vector.shape_cast %18 : vector<1x1x8x128xf32> to vector<8x128xf32>
    %20 = vector.shape_cast %17 : vector<8x128xf32> to vector<1x1x8x128xf32>
    tpu.vector_store %arg3[%c0_11, %c1, %c0_12, %c0_13], %20 {strides = array<i32>} : memref<1x3x8x128xf32, #tpu.memory_space<vmem>>, vector<1x1x8x128xf32>,
    %21 = arith.mulf %10, %1 : vector<16x128xf32>
    %22 = vector.shape_cast %21 : vector<16x128xf32> to vector<2x8x128xf32>
    %cst_14 = arith.constant dense<0.000000e+00> : vector<8x128xf32>
    %23 = vector.multi_reduction <add>, %22, %cst_14 [0] : vector<2x8x128xf32> to vector<8x128xf32>
    %c0_15 = arith.constant 0 : index
    %c2 = arith.constant 2 : index
    %c0_16 = arith.constant 0 : index
    %c0_17 = arith.constant 0 : index
    %24 = vector.load %arg3[%c0_15, %c2, %c0_16, %c0_17] : memref<1x3x8x128xf32, #tpu.memory_space<vmem>>, vector<1x1x8x128xf32>
    %25 = vector.shape_cast %24 : vector<1x1x8x128xf32> to vector<8x128xf32>
    %26 = vector.shape_cast %23 : vector<8x128xf32> to vector<1x1x8x128xf32>
    tpu.vector_store %arg3[%c0_15, %c2, %c0_16, %c0_17], %26 {strides = array<i32>} : memref<1x3x8x128xf32, #tpu.memory_space<vmem>>, vector<1x1x8x128xf32>,
    return
  }
  func.func @transform_0(%arg0: i32) -> (i32, i32) {
    %c0_i32 = arith.constant 0 : i32
    %c0_i32_0 = arith.constant 0 : i32
    return %arg0, %c0_i32 : i32, i32
  }
  func.func @transform_1(%arg0: i32) -> (i32, i32) {
    %c0_i32 = arith.constant 0 : i32
    %c0_i32_0 = arith.constant 0 : i32
    return %arg0, %c0_i32 : i32, i32
  }
  func.func @transform_2(%arg0: i32) -> (i32, i32, i32, i32) {
    %c0_i32 = arith.constant 0 : i32
    %c0_i32_0 = arith.constant 0 : i32
    %c0_i32_1 = arith.constant 0 : i32
    %c0_i32_2 = arith.constant 0 : i32
    return %arg0, %c0_i32, %c0_i32_0, %c0_i32_1 : i32, i32, i32, i32
  }
}

module attributes {stable_mosaic.version = 11 : i64} {
  func.func @_focal_kernel(%arg0: i32, %arg1: memref<3xf32, #tpu.memory_space<smem>>, %arg2: memref<16x128xf32, #tpu.memory_space<vmem>>, %arg3: memref<16x128xf32, #tpu.memory_space<vmem>>, %arg4: memref<1x8x128xf32, #tpu.memory_space<vmem>>) attributes {dimension_semantics = [#tpu.dimension_semantics<parallel>], iteration_bounds = array<i64: 1>, scalar_prefetch = 0 : i64, scratch_operands = 0 : i64, tpu.core_type = #tpu.core_type<tc>, window_params = [{transform_indices = @transform_0, window_bounds = array<i64: 3>}, {transform_indices = @transform_1, window_bounds = array<i64: 16, 128>}, {transform_indices = @transform_2, window_bounds = array<i64: 16, 128>}, {transform_indices = @transform_3, window_bounds = array<i64: 1, 8, 128>}]} {
    %c0 = arith.constant 0 : index
    %0 = memref.load %arg1[%c0] : memref<3xf32, #tpu.memory_space<smem>>
    %c1 = arith.constant 1 : index
    %1 = memref.load %arg1[%c1] : memref<3xf32, #tpu.memory_space<smem>>
    %c2 = arith.constant 2 : index
    %2 = memref.load %arg1[%c2] : memref<3xf32, #tpu.memory_space<smem>>
    %cst = arith.constant 1.000000e+00 : f32
    %3 = arith.addf %2, %cst : f32
    %4 = arith.addf %0, %1 : f32
    %5 = arith.subf %4, %2 : f32
    %cst_0 = arith.constant 1.000000e+00 : f32
    %6 = arith.addf %5, %cst_0 : f32
    %7 = arith.divf %3, %6 : f32
    %cst_1 = arith.constant 1.000000e+00 : f32
    %8 = arith.subf %cst_1, %7 : f32
    %cst_2 = arith.constant 5.000000e-01 : f32
    %9 = arith.mulf %7, %cst_2 : f32
    %cst_3 = arith.constant 5.000000e-01 : f32
    %10 = arith.addf %9, %cst_3 : f32
    %c0_4 = arith.constant 0 : index
    %c0_5 = arith.constant 0 : index
    %11 = vector.load %arg2[%c0_4, %c0_5] : memref<16x128xf32, #tpu.memory_space<vmem>>, vector<16x128xf32>
    %c0_6 = arith.constant 0 : index
    %c0_7 = arith.constant 0 : index
    %12 = vector.load %arg3[%c0_6, %c0_7] : memref<16x128xf32, #tpu.memory_space<vmem>>, vector<16x128xf32>
    %13 = arith.negf %11 : vector<16x128xf32>
    %14 = math.exp %13 : vector<16x128xf32>
    %cst_8 = arith.constant 1.000000e+00 : f32
    %15 = vector.broadcast %cst_8 : f32 to vector<16x128xf32>
    %16 = arith.addf %15, %14 : vector<16x128xf32>
    %17 = arith.divf %15, %16 : vector<16x128xf32>
    %cst_9 = arith.constant 9.990000e-01 : f32
    %18 = vector.broadcast %cst_9 : f32 to vector<16x128xf32>
    %19 = arith.mulf %18, %17 : vector<16x128xf32>
    %cst_10 = arith.constant 5.000000e-04 : f32
    %20 = vector.broadcast %cst_10 : f32 to vector<16x128xf32>
    %21 = arith.addf %19, %20 : vector<16x128xf32>
    %22 = math.log %21 : vector<16x128xf32>
    %23 = arith.mulf %12, %22 : vector<16x128xf32>
    %cst_11 = arith.constant 1.000000e+00 : f32
    %24 = vector.broadcast %cst_11 : f32 to vector<16x128xf32>
    %25 = arith.subf %24, %12 : vector<16x128xf32>
    %cst_12 = arith.constant 1.000000e+00 : f32
    %26 = vector.broadcast %cst_12 : f32 to vector<16x128xf32>
    %27 = arith.subf %26, %21 : vector<16x128xf32>
    %28 = math.log %27 : vector<16x128xf32>
    %29 = arith.mulf %25, %28 : vector<16x128xf32>
    %30 = arith.addf %23, %29 : vector<16x128xf32>
    %cst_13 = arith.constant 0.000000e+00 : f32
    %31 = vector.broadcast %cst_13 : f32 to vector<16x128xf32>
    %32 = arith.subf %31, %30 : vector<16x128xf32>
    %cst_14 = arith.constant 0.000000e+00 : f32
    %33 = vector.broadcast %cst_14 : f32 to vector<16x128xf32>
    %34 = arith.subf %33, %32 : vector<16x128xf32>
    %35 = math.exp %34 : vector<16x128xf32>
    %cst_15 = arith.constant 1.000000e+00 : f32
    %36 = vector.broadcast %cst_15 : f32 to vector<16x128xf32>
    %37 = arith.subf %36, %35 : vector<16x128xf32>
    %38 = arith.mulf %37, %37 : vector<16x128xf32>
    %39 = arith.mulf %38, %32 : vector<16x128xf32>
    %40 = math.log %39 : vector<16x128xf32>
    %41 = vector.broadcast %10 : f32 to vector<16x128xf32>
    %42 = arith.mulf %41, %40 : vector<16x128xf32>
    %43 = math.exp %42 : vector<16x128xf32>
    %44 = vector.broadcast %8 : f32 to vector<16x128xf32>
    %45 = arith.mulf %44, %43 : vector<16x128xf32>
    %cst_16 = arith.constant 7.500000e-01 : f32
    %46 = vector.broadcast %cst_16 : f32 to vector<16x128xf32>
    %47 = arith.mulf %12, %46 : vector<16x128xf32>
    %cst_17 = arith.constant 1.000000e+00 : f32
    %48 = vector.broadcast %cst_17 : f32 to vector<16x128xf32>
    %49 = arith.subf %48, %12 : vector<16x128xf32>
    %cst_18 = arith.constant 2.500000e-01 : f32
    %50 = vector.broadcast %cst_18 : f32 to vector<16x128xf32>
    %51 = arith.mulf %49, %50 : vector<16x128xf32>
    %52 = arith.addf %47, %51 : vector<16x128xf32>
    %53 = arith.mulf %52, %45 : vector<16x128xf32>
    %54 = vector.shape_cast %53 : vector<16x128xf32> to vector<2x8x128xf32>
    %cst_19 = arith.constant dense<0.000000e+00> : vector<8x128xf32>
    %55 = vector.multi_reduction <add>, %54, %cst_19 [0] : vector<2x8x128xf32> to vector<8x128xf32>
    %c0_20 = arith.constant 0 : index
    %c0_21 = arith.constant 0 : index
    %c0_22 = arith.constant 0 : index
    %56 = vector.load %arg4[%c0_20, %c0_21, %c0_22] : memref<1x8x128xf32, #tpu.memory_space<vmem>>, vector<1x8x128xf32>
    %57 = vector.shape_cast %56 : vector<1x8x128xf32> to vector<8x128xf32>
    %58 = vector.shape_cast %55 : vector<8x128xf32> to vector<1x8x128xf32>
    tpu.vector_store %arg4[%c0_20, %c0_21, %c0_22], %58 {strides = array<i32>} : memref<1x8x128xf32, #tpu.memory_space<vmem>>, vector<1x8x128xf32>,
    return
  }
  func.func @transform_0(%arg0: i32) -> i32 {
    %c0_i32 = arith.constant 0 : i32
    %c0_i32_0 = arith.constant 0 : i32
    return %c0_i32 : i32
  }
  func.func @transform_1(%arg0: i32) -> (i32, i32) {
    %c0_i32 = arith.constant 0 : i32
    %c0_i32_0 = arith.constant 0 : i32
    return %arg0, %c0_i32 : i32, i32
  }
  func.func @transform_2(%arg0: i32) -> (i32, i32) {
    %c0_i32 = arith.constant 0 : i32
    %c0_i32_0 = arith.constant 0 : i32
    return %arg0, %c0_i32 : i32, i32
  }
  func.func @transform_3(%arg0: i32) -> (i32, i32, i32) {
    %c0_i32 = arith.constant 0 : i32
    %c0_i32_0 = arith.constant 0 : i32
    %c0_i32_1 = arith.constant 0 : i32
    return %arg0, %c0_i32, %c0_i32_0 : i32, i32, i32
  }
}

</mosaic_0001>

<llo_original>
// kernel: focal_iou_loss.3
$region0: #{focal_iou_loss.3}
  #allocation0 [shape = 'u32[]', space=smem, size = 0x4, offset = 0x4, fixed_abs, tag = 'smem constant byte address 0x4 - core index']
  #allocation1 [shape = 'u32[144,128]{1,0:T(1,128)}', space=vmem, size = 0x12000, scoped, tag = 'internal scratch']
  %s0 = inlined_call_operand.vmem [shape: f32[3], index: 0, kind: input, shape index: {}]
  %s1 = inlined_call_operand.vmem [shape: f32[16,128], index: 1, kind: input, shape index: {}]
  %s2 = inlined_call_operand.vmem [shape: f32[16,128], index: 2, kind: input, shape index: {}]
  %s3 = inlined_call_operand.vmem [shape: f32[1,8,128], index: 3, kind: output, shape index: {}]
  %s4 = sld [smem:[#allocation0]]
  $region26: #{focal_iou_loss.3} parent=0
    _
  %s6 = ssub.s32 1, %s4
  %s7 = scalar_select 0, %s6, %s4
  $region1: #{focal_iou_loss.3} parent=0
    #allocation2 [shape = 'u8[512]{0}', space=smem, size = 0x200, scoped, tag = 'input window, operand 0, single buffered']
    #allocation3 [shape = 's32[1]{0}', space=sflag, size = 0x4, scoped, tag = 'scoped memory for focal_iou_loss.3']
    %8 = vsyncpa [#allocation3], 0
    // Predicated region
    $region2: #{focal_iou_loss.3} parent=1 // pred_check
      _
    $region3: #{focal_iou_loss.3} parent=1 // pred_check_branch
      %10 = sbr.rel (0) target = $region5
    $region4: #{focal_iou_loss.3} parent=1 // pred_region
      %s12 = ssub.s32 16, 16
      %13 = vsyncadd [#allocation3], %s12
      %s15 = sshll.u32 %s0, 4
      %s16 = int_to_ptr.vmem [resolvable:$true] %s15
      %18 = dma.vmem_to_smem %s16, 16, [#allocation2], [#allocation3]
    $region5: #{focal_iou_loss.3} parent=1 // pred_fallthru
      _
    // Predicated region
    $region6: #{focal_iou_loss.3} parent=1 // pred_check
      _
    $region7: #{focal_iou_loss.3} parent=1 // pred_check_branch
      %20 = sbr.rel (0) target = $region9
    $region8: #{focal_iou_loss.3} parent=1 // pred_region
      _
    $region9: #{focal_iou_loss.3} parent=1 // pred_fallthru
      _
    // Predicated region
    $region10: #{focal_iou_loss.3} parent=1 // pred_check
      _
    $region11: #{focal_iou_loss.3} parent=1 // pred_check_branch
      %22 = sbr.rel (0) target = $region13
    $region12: #{focal_iou_loss.3} parent=1 // pred_region
      _
    $region13: #{focal_iou_loss.3} parent=1 // pred_fallthru
      _
    // Predicated region
    $region14: #{focal_iou_loss.3} parent=1 // pred_check
      _
    $region15: #{focal_iou_loss.3} parent=1 // pred_check_branch
      %24 = sbr.rel (0) target = $region17
    $region16: #{focal_iou_loss.3} parent=1 // pred_region
      %25 = dma.done [#allocation3], 16
    $region17: #{focal_iou_loss.3} parent=1 // pred_fallthru
      _
    %26 = sfence
    %s27 = sld [smem:[#allocation2]]
    %s28 = sld [smem:[#allocation2 + $0x1]]
    %s29 = sld [smem:[#allocation2 + $0x2]]
    %s30 = sadd.f32 %s29, 1.0
    %s31 = sadd.f32 %s27, %s28
    %s32 = ssub.f32 %s31, %s29
    %s33 = sadd.f32 %s32, 1.0
    %v34 = vstv %s33
    %v35 = vrcp.pop %v34
    %s36 = vtos %v35
    %s37 = smul.f32 %s30, %s36
    %s38 = ssub.f32 1.0, %s37
    %s39 = smul.f32 %s37, 0.5
    %s40 = sadd.f32 %s39, 0.5
    %v41 = vld [vmem:[%s1] sm:$0xff]
    %v42 = vld [vmem:[%s1 + $0x8] sm:$0xff]
    %v43 = vld [vmem:[%s2] sm:$0xff]
    %v44 = vld [vmem:[%s2 + $0x8] sm:$0xff]
    %v45 = vxor.u32 %v41, 2147483648
    %v46 = vxor.u32 %v42, 2147483648
    %v47 = vmul.f32 %v45, 1.442695
    %v48 = vpow.pop %v47
    %v49 = vmul.f32 %v46, 1.442695
    %v50 = vpow.pop %v49
    %v51 = vadd.f32 %v48, 1.0
    %v52 = vadd.f32 %v50, 1.0
    %v53 = vrcp.pop %v51
    %v54 = vmul.f32 1.0, %v53
    %v55 = vrcp.pop %v52
    %v56 = vmul.f32 1.0, %v55
    %v57 = vmul.f32 %v54, 0.999
    %v58 = vmul.f32 %v56, 0.999
    %v59 = vadd.f32 %v57, 0.0005
    %v60 = vadd.f32 %v58, 0.0005
    %v61 = vlog2.pop %v59
    %v62 = vmul.f32 %v61, 0.6931472
    %v63 = vlog2.pop %v60
    %v64 = vmul.f32 %v63, 0.6931472
    %v65 = vmul.f32 %v43, %v62
    %v66 = vmul.f32 %v44, %v64
    %v67 = vsub.f32 1.0, %v43
    %v68 = vsub.f32 1.0, %v44
    %v69 = vsub.f32 1.0, %v59
    %v70 = vsub.f32 1.0, %v60
    %v71 = vlog2.pop %v69
    %v72 = vmul.f32 %v71, 0.6931472
    %v73 = vlog2.pop %v70
    %v74 = vmul.f32 %v73, 0.6931472
    %v75 = vmul.f32 %v67, %v72
    %v76 = vmul.f32 %v68, %v74
    %v77 = vadd.f32 %v65, %v75
    %v78 = vadd.f32 %v66, %v76
    %v79 = vsub.f32 0.0, %v77
    %v80 = vsub.f32 0.0, %v78
    %v81 = vsub.f32 0.0, %v79
    %v82 = vsub.f32 0.0, %v80
    %v83 = vmul.f32 %v81, 1.442695
    %v84 = vpow.pop %v83
    %v85 = vmul.f32 %v82, 1.442695
    %v86 = vpow.pop %v85
    %v87 = vsub.f32 1.0, %v84
    %v88 = vsub.f32 1.0, %v86
    %v89 = vmul.f32 %v87, %v87
    %v90 = vmul.f32 %v88, %v88
    %v91 = vmul.f32 %v89, %v79
    %v92 = vmul.f32 %v90, %v80
    %v93 = vlog2.pop %v91
    %v94 = vmul.f32 %v93, 0.6931472
    %v95 = vlog2.pop %v92
    %v96 = vmul.f32 %v95, 0.6931472
    %v97 = vstv %s40
    %v98 = vmul.f32 %v97, %v94
    %v99 = vmul.f32 %v97, %v96
    %v100 = vmul.f32 %v98, 1.442695
    %v101 = vpow.pop %v100
    %v102 = vmul.f32 %v99, 1.442695
    %v103 = vpow.pop %v102
    %v104 = vstv %s38
    %v105 = vmul.f32 %v104, %v101
    %v106 = vmul.f32 %v104, %v103
    %v107 = vmul.f32 %v43, 0.75
    %v108 = vmul.f32 %v44, 0.75
    %v109 = vmul.f32 %v67, 0.25
    %v110 = vmul.f32 %v68, 0.25
    %v111 = vadd.f32 %v107, %v109
    %v112 = vadd.f32 %v108, %v110
    %v113 = vmul.f32 %v111, %v105
    %v114 = vmul.f32 %v112, %v106
    %v115 = vadd.f32 %v113, %v114
    %116 = vst [vmem:[%s3] sm:$0xff] %v115
    // Predicated region
    $region18: #{focal_iou_loss.3} parent=1 // pred_check
      _
    $region19: #{focal_iou_loss.3} parent=1 // pred_check_branch
      %118 = sbr.rel (0) target = $region21
    $region20: #{focal_iou_loss.3} parent=1 // pred_region
      _
    $region21: #{focal_iou_loss.3} parent=1 // pred_fallthru
      _
    // Predicated region
    $region22: #{focal_iou_loss.3} parent=1 // pred_check
      _
    $region23: #{focal_iou_loss.3} parent=1 // pred_check_branch
      %120 = sbr.rel (0) target = $region25
    $region24: #{focal_iou_loss.3} parent=1 // pred_region
      _
    $region25: #{focal_iou_loss.3} parent=1 // pred_fallthru
      _
    %121 = vsyncpa [#allocation3], 1

// kernel: focal_iou_loss.2
$region0: #{focal_iou_loss.2}
  #allocation0 [shape = 'u32[]', space=smem, size = 0x4, offset = 0x4, fixed_abs, tag = 'smem constant byte address 0x4 - core index']
  #allocation1 [shape = 'u32[144,128]{1,0:T(1,128)}', space=vmem, size = 0x12000, scoped, tag = 'internal scratch']
  %s0 = inlined_call_operand.vmem [shape: f32[16,128], index: 0, kind: input, shape index: {}]
  %s1 = inlined_call_operand.vmem [shape: f32[16,128], index: 1, kind: input, shape index: {}]
  %s2 = inlined_call_operand.vmem [shape: f32[1,3,8,128], index: 2, kind: output, shape index: {}]
  %s3 = sld [smem:[#allocation0]]
  $region18: #{focal_iou_loss.2} parent=0
    _
  %s5 = ssub.s32 1, %s3
  %s6 = scalar_select 0, %s5, %s3
  // Predicated region
  $region2: #{focal_iou_loss.2} parent=0 // pred_check
    _
  $region3: #{focal_iou_loss.2} parent=0 // pred_check_branch
    %8 = sbr.rel (0) target = $region5
  $region4: #{focal_iou_loss.2} parent=0 // pred_region
    _
  $region5: #{focal_iou_loss.2} parent=0 // pred_fallthru
    _
  // Predicated region
  $region6: #{focal_iou_loss.2} parent=0 // pred_check
    _
  $region7: #{focal_iou_loss.2} parent=0 // pred_check_branch
    %10 = sbr.rel (0) target = $region9
  $region8: #{focal_iou_loss.2} parent=0 // pred_region
    _
  $region9: #{focal_iou_loss.2} parent=0 // pred_fallthru
    _
  %v11 = vld [vmem:[%s0] sm:$0xff]
  %v12 = vld [vmem:[%s0 + $0x8] sm:$0xff]
  %v13 = vld [vmem:[%s1] sm:$0xff]
  %v14 = vld [vmem:[%s1 + $0x8] sm:$0xff]
  %v15 = vxor.u32 %v11, 2147483648
  %v16 = vxor.u32 %v12, 2147483648
  %v17 = vmul.f32 %v15, 1.442695
  %v18 = vpow.pop %v17
  %v19 = vmul.f32 %v16, 1.442695
  %v20 = vpow.pop %v19
  %v21 = vadd.f32 %v18, 1.0
  %v22 = vadd.f32 %v20, 1.0
  %v23 = vrcp.pop %v21
  %v24 = vmul.f32 1.0, %v23
  %v25 = vrcp.pop %v22
  %v26 = vmul.f32 1.0, %v25
  %v27 = vmul.f32 %v24, 0.999
  %v28 = vmul.f32 %v26, 0.999
  %v29 = vadd.f32 %v27, 0.0005
  %v30 = vadd.f32 %v28, 0.0005
  %v31 = vadd.f32 %v29, %v30
  %32 = vst [vmem:[%s2] sm:$0xff] %v31
  %v33 = vadd.f32 %v13, %v14
  %s34 = scalar_lea.vmem %s2, 8
  %35 = vst [vmem:[%s34] sm:$0xff] %v33
  %v36 = vmul.f32 %v29, %v13
  %v37 = vmul.f32 %v30, %v14
  %v38 = vadd.f32 %v36, %v37
  %s39 = scalar_lea.vmem %s2, 16
  %40 = vst [vmem:[%s39] sm:$0xff] %v38
  // Predicated region
  $region10: #{focal_iou_loss.2} parent=0 // pred_check
    _
  $region11: #{focal_iou_loss.2} parent=0 // pred_check_branch
    %42 = sbr.rel (0) target = $region13
  $region12: #{focal_iou_loss.2} parent=0 // pred_region
    _
  $region13: #{focal_iou_loss.2} parent=0 // pred_fallthru
    _
  // Predicated region
  $region14: #{focal_iou_loss.2} parent=0 // pred_check
    _
  $region15: #{focal_iou_loss.2} parent=0 // pred_check_branch
    %44 = sbr.rel (0) target = $region17
  $region16: #{focal_iou_loss.2} parent=0 // pred_region
    _
  $region17: #{focal_iou_loss.2} parent=0 // pred_fallthru
    _

</llo_original>
